<compile_context>
chip_gen: v7x
topology: tpu7x:2x2x1
jax: 0.10.0
libtpu: 0.0.40
codegen_flags: <defaults>
</compile_context>

<pallas_src>
import functools

import jax
import jax.numpy as jnp
from jax.experimental import pallas as pl


# ----------------------------------------------------------------------------
# Shared LSTM recurrence (fully unrolled; T is small and static).
#   xg       : (T*N, 4H) f32  -- precomputed x@W_ih + bias, time-major slabs
#   w_hh_bf16: (H, 4H)   bf16 -- gate columns pre-permuted to [i, f, o, g]
#   h, c     : (N, H)    f32
# ----------------------------------------------------------------------------
def _lstm_recurrence(xg, w_hh_bf16, h, c, T, N, H):
    # lane_scale = 0.5 on the sigmoid lanes [0, 3H), 1.0 on the tanh lanes
    # [3H, 4H): one tanh over the whole (N, 4H) vreg implements all four gate
    # nonlinearities via sigmoid(x) = 0.5*tanh(0.5*x) + 0.5.
    lane_idx = jax.lax.broadcasted_iota(jnp.int32, (1, 4 * H), 1)
    lane_scale = jnp.where(lane_idx < 3 * H, 0.5, 1.0).astype(jnp.float32)

    for t in range(T):                                   # static unroll (small T)
        xg_t = xg[t * N:(t + 1) * N, :]                  # (N, 4H) aligned slab
        gates = xg_t + jnp.dot(h.astype(jnp.bfloat16), w_hh_bf16,
                               preferred_element_type=jnp.float32)
        t_all = jnp.tanh(gates * lane_scale)             # single EUP issue
        sg = 0.5 * t_all[:, :3 * H] + 0.5                # i, f, o sigmoids
        i_g = sg[:, 0 * H:1 * H]
        f_g = sg[:, 1 * H:2 * H]
        o_g = sg[:, 2 * H:3 * H]
        g_g = t_all[:, 3 * H:4 * H]                      # tanh(g)
        c = f_g * c + i_g * g_g
        h = o_g * jnp.tanh(c)                            # second EUP issue
    return h, c


# ----------------------------------------------------------------------------
# Fused kernel: hoisted input projection + LSTM scan + lane-dense classifier.
# Single invocation (no grid) -- total VMEM residency is well under 100 KiB.
# ----------------------------------------------------------------------------
def _lstm_classify_kernel(x_ref, wih_ref, whh_ref, b_ref, h0_ref, c0_ref,
                          wcls_ref, bcls_ref, o_ref, *, T):
    TN, _ = x_ref.shape
    N = TN // T
    H = whh_ref.shape[0]
    # Hoisted input projection: one batched bf16 matmul, bias folded in.
    xg = jnp.dot(x_ref[...].astype(jnp.bfloat16), wih_ref[...],
                 preferred_element_type=jnp.float32) + b_ref[...]
    h = pl.broadcast_to(h0_ref[...], (N, H))             # (1,H) -> (N,H)
    c = pl.broadcast_to(c0_ref[...], (N, H))
    h, _ = _lstm_recurrence(xg, whh_ref[...], h, c, T, N, H)
    # Eval-mode dropout == identity. Classifier output is lane-dense (N, 128).
    o_ref[...] = (jnp.dot(h, wcls_ref[...], preferred_element_type=jnp.float32)
                  + bcls_ref[...])


# ----------------------------------------------------------------------------
# Key-gate kernel: run the key buffer through the same LSTM (zero init) and
# emit the mean final (h, c) as (1, H).  Called exactly once at model init.
# ----------------------------------------------------------------------------
def _key_gate_kernel(key_ref, wih_ref, whh_ref, b_ref, h0_ref, c0_ref, *, T):
    TK, _ = key_ref.shape
    K = TK // T
    H = whh_ref.shape[0]
    xg = jnp.dot(key_ref[...].astype(jnp.bfloat16), wih_ref[...],
                 preferred_element_type=jnp.float32) + b_ref[...]
    h = jnp.zeros((K, H), jnp.float32)
    c = jnp.zeros((K, H), jnp.float32)
    h, c = _lstm_recurrence(xg, whh_ref[...], h, c, T, K, H)
    inv_k = 1.0 / K
    h0_ref[...] = jnp.sum(h, axis=0, keepdims=True) * inv_k
    c0_ref[...] = jnp.sum(c, axis=0, keepdims=True) * inv_k


# ----------------------------------------------------------------------------
# pallas_call wrappers
# ----------------------------------------------------------------------------
def key_gate(key_ktd, w_ih_t, w_hh_t, b_rnn):
    """key_ktd: (K, T, D). Returns (h0, c0), each (1, H) f32."""
    K, T, D = key_ktd.shape
    H = w_hh_t.shape[0]
    key_flat = jnp.transpose(key_ktd, (1, 0, 2)).reshape(T * K, D)
    return pl.pallas_call(
        functools.partial(_key_gate_kernel, T=T),
        out_shape=(jax.ShapeDtypeStruct((1, H), jnp.float32),
                   jax.ShapeDtypeStruct((1, H), jnp.float32)),
        in_specs=[
            pl.BlockSpec((T * K, D), lambda: (0, 0)),       # key, time-major flat
            pl.BlockSpec((D, 4 * H), lambda: (0, 0)),       # W_ih^T (bf16, permuted)
            pl.BlockSpec((H, 4 * H), lambda: (0, 0)),       # W_hh^T (bf16, permuted)
            pl.BlockSpec((1, 4 * H), lambda: (0, 0)),       # b_ih + b_hh (permuted)
        ],
        out_specs=(pl.BlockSpec((1, H), lambda: (0, 0)),
                   pl.BlockSpec((1, H), lambda: (0, 0))),
    )(key_flat, w_ih_t, w_hh_t, b_rnn)


def lstm_classify(x_btd, params, h0, c0):
    """x_btd: (B, T, D) batch-first.  Returns padded logits (B, O_pad)."""
    B, T, D = x_btd.shape
    H = params["w_hh_t"].shape[0]
    O_pad = params["w_cls_t"].shape[1]
    x_flat = jnp.transpose(x_btd, (1, 0, 2)).reshape(T * B, D)   # time-major slabs
    return pl.pallas_call(
        functools.partial(_lstm_classify_kernel, T=T),
        out_shape=jax.ShapeDtypeStruct((B, O_pad), jnp.float32),
        in_specs=[
            pl.BlockSpec((T * B, D), lambda: (0, 0)),       # x, time-major flat
            pl.BlockSpec((D, 4 * H), lambda: (0, 0)),       # W_ih^T (bf16, permuted)
            pl.BlockSpec((H, 4 * H), lambda: (0, 0)),       # W_hh^T (bf16, permuted)
            pl.BlockSpec((1, 4 * H), lambda: (0, 0)),       # b_ih + b_hh (permuted)
            pl.BlockSpec((1, H), lambda: (0, 0)),           # h0 (broadcast in-kernel)
            pl.BlockSpec((1, H), lambda: (0, 0)),           # c0
            pl.BlockSpec((H, O_pad), lambda: (0, 0)),       # W_cls^T (lane-padded)
            pl.BlockSpec((1, O_pad), lambda: (0, 0)),       # cls bias (lane-padded)
        ],
        out_specs=pl.BlockSpec((B, O_pad), lambda: (0, 0)),
    )(x_flat, params["w_ih_t"], params["w_hh_t"], params["b_rnn"],
      h0, c0, params["w_cls_t"], params["b_cls"])


# ----------------------------------------------------------------------------
# Parameter handling
# ----------------------------------------------------------------------------
def init_raw_params(rng, input_dim, hidden_dim, output_dim):
    """Raw weights in PyTorch nn.LSTM / nn.Linear layout, f32."""
    ks = jax.random.split(rng, 7)
    s = 0.1
    raw = {
        "w_ih": jax.random.normal(ks[0], (4 * hidden_dim, input_dim), jnp.float32) * s,
        "w_hh": jax.random.normal(ks[1], (4 * hidden_dim, hidden_dim), jnp.float32) * s,
        "b_ih": jax.random.normal(ks[2], (4 * hidden_dim,), jnp.float32) * s,
        "b_hh": jax.random.normal(ks[3], (4 * hidden_dim,), jnp.float32) * s,
        "w_cls": jax.random.normal(ks[4], (output_dim, hidden_dim), jnp.float32) * s,
        "b_cls": jax.random.normal(ks[5], (output_dim,), jnp.float32) * s,
    }
    return raw, ks[6]


def prepare_params(raw, lanes=128):
    """Kernel-side layout: gate columns permuted [i,f,g,o]->[i,f,o,g], matmul
    weights in bf16, both LSTM biases summed, classifier padded lane-dense."""
    H = raw["w_hh"].shape[1]
    O = raw["w_cls"].shape[0]
    O_pad = ((O + lanes - 1) // lanes) * lanes
    perm = jnp.concatenate([jnp.arange(0, 2 * H),          # i, f
                            jnp.arange(3 * H, 4 * H),       # o
                            jnp.arange(2 * H, 3 * H)])      # g (tanh) last
    w_ih_t = raw["w_ih"].T[:, perm].astype(jnp.bfloat16)            # (D, 4H)
    w_hh_t = raw["w_hh"].T[:, perm].astype(jnp.bfloat16)            # (H, 4H)
    b_rnn = (raw["b_ih"] + raw["b_hh"])[perm].reshape(1, 4 * H)     # (1, 4H) f32
    w_cls_t = jnp.zeros((H, O_pad), jnp.float32).at[:, :O].set(raw["w_cls"].T)
    b_cls = jnp.zeros((1, O_pad), jnp.float32).at[0, :O].set(raw["b_cls"])
    return {"w_ih_t": w_ih_t, "w_hh_t": w_hh_t, "b_rnn": b_rnn,
            "w_cls_t": w_cls_t, "b_cls": b_cls}


# ----------------------------------------------------------------------------
# MNISTKeyedRNN forward (eval mode: dropout = identity).
# ----------------------------------------------------------------------------
class MNISTKeyedRNNPallas:
    def __init__(self, raw_params, key_buffer):
        self.params = prepare_params(raw_params)
        self.output_dim = raw_params["w_cls"].shape[0]
        H = self.params["w_hh_t"].shape[0]
        # Key gate depends only on the key buffer + LSTM weights: compute once.
        h0k, c0k = key_gate(key_buffer.astype(jnp.float32),
                            self.params["w_ih_t"], self.params["w_hh_t"],
                            self.params["b_rnn"])
        self.h0_key = jax.block_until_ready(h0k)
        self.c0_key = jax.block_until_ready(c0k)
        self.h0_zero = jnp.zeros((1, H), jnp.float32)
        self.c0_zero = jnp.zeros((1, H), jnp.float32)

    def __call__(self, x, use_key=True):
        """x: (B, T, D) batch-first, like PyTorch. Returns logits (B, output_dim)."""
        if use_key:
            h0, c0 = self.h0_key, self.c0_key
        else:
            h0, c0 = self.h0_zero, self.c0_zero
        out_padded = lstm_classify(x.astype(jnp.float32), self.params, h0, c0)
        return out_padded[:, :self.output_dim]


# ----------------------------------------------------------------------------
# Pure-JAX f32 reference (torch gate order, un-permuted weights) for checking.
# ----------------------------------------------------------------------------
def reference_forward(raw, x, key_buf, use_key=True):
    H = raw["w_hh"].shape[1]
    b = raw["b_ih"] + raw["b_hh"]

    def scan(xs, h, c):
        for t in range(xs.shape[1]):
            g = xs[:, t, :] @ raw["w_ih"].T + h @ raw["w_hh"].T + b
            i = jax.nn.sigmoid(g[:, 0 * H:1 * H])
            f = jax.nn.sigmoid(g[:, 1 * H:2 * H])
            gg = jnp.tanh(g[:, 2 * H:3 * H])
            o = jax.nn.sigmoid(g[:, 3 * H:4 * H])
            c = f * c + i * gg
            h = o * jnp.tanh(c)
        return h, c

    if use_key:
        K = key_buf.shape[0]
        hk, ck = scan(key_buf, jnp.zeros((K, H)), jnp.zeros((K, H)))
        h0, c0 = hk.mean(0, keepdims=True), ck.mean(0, keepdims=True)
    else:
        h0 = jnp.zeros((1, H)); c0 = jnp.zeros((1, H))
    B = x.shape[0]
    h, _ = scan(x, jnp.broadcast_to(h0, (B, H)), jnp.broadcast_to(c0, (B, H)))
    return h @ raw["w_cls"].T + raw["b_cls"]


if __name__ == "__main__":
    # Small shapes consistent with the module's conventions:
    #   batch B=8, seq T=8 (rows), input_dim D=16, hidden H=32 (4H=128,
    #   lane-aligned gates), output O=10 (padded to 128 lanes), K=8 keys.
    B, T, D, H, O, K = 8, 8, 16, 32, 10, 8

    rng = jax.random.PRNGKey(0)
    raw, rng = init_raw_params(rng, input_dim=D, hidden_dim=H, output_dim=O)
    kx, kk = jax.random.split(rng)
    x = jax.random.normal(kx, (B, T, D), jnp.float32)
    key_buf = jax.random.normal(kk, (K, T, D), jnp.float32)

    model = MNISTKeyedRNNPallas(raw, key_buf)

    logits = jax.block_until_ready(model(x, use_key=True))
    assert logits.shape == (B, O), logits.shape
    assert bool(jnp.all(jnp.isfinite(logits)))
    ref = reference_forward(raw, x, key_buf, use_key=True)
    assert bool(jnp.allclose(logits, ref, atol=7.5e-2, rtol=7.5e-2)), (
        float(jnp.max(jnp.abs(logits - ref))))

    logits_nokey = jax.block_until_ready(model(x, use_key=False))
    assert logits_nokey.shape == (B, O), logits_nokey.shape
    assert bool(jnp.all(jnp.isfinite(logits_nokey)))
    ref_nokey = reference_forward(raw, x, key_buf, use_key=False)
    assert bool(jnp.allclose(logits_nokey, ref_nokey, atol=7.5e-2, rtol=7.5e-2)), (
        float(jnp.max(jnp.abs(logits_nokey - ref_nokey))))

    print("KERNEL_OK")
</pallas_src>

<mosaic_0001>
module attributes {stable_mosaic.version = 11 : i64} {
  func.func @_key_gate_kernel(%arg0: memref<64x16xf32, #tpu.memory_space<vmem>>, %arg1: memref<16x128xbf16, #tpu.memory_space<vmem>>, %arg2: memref<32x128xbf16, #tpu.memory_space<vmem>>, %arg3: memref<1x128xf32, #tpu.memory_space<vmem>>, %arg4: memref<1x32xf32, #tpu.memory_space<vmem>>, %arg5: memref<1x32xf32, #tpu.memory_space<vmem>>) attributes {dimension_semantics = [], scalar_prefetch = 0 : i64, scratch_operands = 0 : i64, tpu.core_type = #tpu.core_type<tc>} {
    %c0 = arith.constant 0 : index
    %c0_0 = arith.constant 0 : index
    %0 = vector.load %arg0[%c0, %c0_0] : memref<64x16xf32, #tpu.memory_space<vmem>>, vector<64x16xf32>
    %1 = arith.truncf %0 : vector<64x16xf32> to vector<64x16xbf16>
    %c0_1 = arith.constant 0 : index
    %c0_2 = arith.constant 0 : index
    %2 = vector.load %arg1[%c0_1, %c0_2] : memref<16x128xbf16, #tpu.memory_space<vmem>>, vector<16x128xbf16>
    %cst = arith.constant dense<0.000000e+00> : vector<64x128xf32>
    %3 = tpu.matmul %1, %2, %cst {dimension_numbers = #tpu.dot_dimension_numbers<[1], [0], [0], [1], [0, 0, 1, 1], [], []>} : vector<64x16xbf16>, vector<16x128xbf16>, vector<64x128xf32> -> vector<64x128xf32>
    %c0_3 = arith.constant 0 : index
    %c0_4 = arith.constant 0 : index
    %4 = vector.load %arg3[%c0_3, %c0_4] : memref<1x128xf32, #tpu.memory_space<vmem>>, vector<1x128xf32>
    %5 = vector.broadcast %4 : vector<1x128xf32> to vector<64x128xf32>
    %6 = arith.addf %3, %5 : vector<64x128xf32>
    %cst_5 = arith.constant 0.000000e+00 : f32
    %7 = vector.broadcast %cst_5 : f32 to vector<8x32xf32>
    %cst_6 = arith.constant 0.000000e+00 : f32
    %8 = vector.broadcast %cst_6 : f32 to vector<8x32xf32>
    %c0_7 = arith.constant 0 : index
    %c0_8 = arith.constant 0 : index
    %9 = vector.load %arg2[%c0_7, %c0_8] : memref<32x128xbf16, #tpu.memory_space<vmem>>, vector<32x128xbf16>
    %10 = tpu.iota {dimensions = array<i32: 1>} : vector<1x128xi32>
    %c96_i32 = arith.constant 96 : i32
    %11 = vector.broadcast %c96_i32 : i32 to vector<1x128xi32>
    %12 = arith.cmpi slt, %10, %11 : vector<1x128xi32>
    %cst_9 = arith.constant 5.000000e-01 : f32
    %cst_10 = arith.constant 1.000000e+00 : f32
    %13 = vector.broadcast %cst_9 : f32 to vector<1x128xf32>
    %14 = vector.broadcast %cst_10 : f32 to vector<1x128xf32>
    %15 = arith.select %12, %13, %14 : vector<1x128xi1>, vector<1x128xf32>
    %16 = vector.extract_strided_slice %6 {offsets = [0, 0], sizes = [8, 128], strides = [1, 1]} : vector<64x128xf32> to vector<8x128xf32>
    %17 = arith.truncf %7 : vector<8x32xf32> to vector<8x32xbf16>
    %cst_11 = arith.constant dense<0.000000e+00> : vector<8x128xf32>
    %18 = tpu.matmul %17, %9, %cst_11 {dimension_numbers = #tpu.dot_dimension_numbers<[1], [0], [0], [1], [0, 0, 1, 1], [], []>} : vector<8x32xbf16>, vector<32x128xbf16>, vector<8x128xf32> -> vector<8x128xf32>
    %19 = arith.addf %16, %18 : vector<8x128xf32>
    %20 = vector.broadcast %15 : vector<1x128xf32> to vector<8x128xf32>
    %21 = arith.mulf %19, %20 : vector<8x128xf32>
    %22 = math.tanh %21 : vector<8x128xf32>
    %23 = vector.extract_strided_slice %22 {offsets = [0, 0], sizes = [8, 96], strides = [1, 1]} : vector<8x128xf32> to vector<8x96xf32>
    %cst_12 = arith.constant 5.000000e-01 : f32
    %24 = vector.broadcast %cst_12 : f32 to vector<8x96xf32>
    %25 = arith.mulf %24, %23 : vector<8x96xf32>
    %cst_13 = arith.constant 5.000000e-01 : f32
    %26 = vector.broadcast %cst_13 : f32 to vector<8x96xf32>
    %27 = arith.addf %25, %26 : vector<8x96xf32>
    %28 = vector.extract_strided_slice %27 {offsets = [0, 0], sizes = [8, 32], strides = [1, 1]} : vector<8x96xf32> to vector<8x32xf32>
    %29 = vector.extract_strided_slice %27 {offsets = [0, 32], sizes = [8, 32], strides = [1, 1]} : vector<8x96xf32> to vector<8x32xf32>
    %30 = vector.extract_strided_slice %27 {offsets = [0, 64], sizes = [8, 32], strides = [1, 1]} : vector<8x96xf32> to vector<8x32xf32>
    %31 = vector.extract_strided_slice %22 {offsets = [0, 96], sizes = [8, 32], strides = [1, 1]} : vector<8x128xf32> to vector<8x32xf32>
    %32 = arith.mulf %29, %8 : vector<8x32xf32>
    %33 = arith.mulf %28, %31 : vector<8x32xf32>
    %34 = arith.addf %32, %33 : vector<8x32xf32>
    %35 = math.tanh %34 : vector<8x32xf32>
    %36 = arith.mulf %30, %35 : vector<8x32xf32>
    %37 = vector.extract_strided_slice %6 {offsets = [8, 0], sizes = [8, 128], strides = [1, 1]} : vector<64x128xf32> to vector<8x128xf32>
    %38 = arith.truncf %36 : vector<8x32xf32> to vector<8x32xbf16>
    %cst_14 = arith.constant dense<0.000000e+00> : vector<8x128xf32>
    %39 = tpu.matmul %38, %9, %cst_14 {dimension_numbers = #tpu.dot_dimension_numbers<[1], [0], [0], [1], [0, 0, 1, 1], [], []>} : vector<8x32xbf16>, vector<32x128xbf16>, vector<8x128xf32> -> vector<8x128xf32>
    %40 = arith.addf %37, %39 : vector<8x128xf32>
    %41 = vector.broadcast %15 : vector<1x128xf32> to vector<8x128xf32>
    %42 = arith.mulf %40, %41 : vector<8x128xf32>
    %43 = math.tanh %42 : vector<8x128xf32>
    %44 = vector.extract_strided_slice %43 {offsets = [0, 0], sizes = [8, 96], strides = [1, 1]} : vector<8x128xf32> to vector<8x96xf32>
    %cst_15 = arith.constant 5.000000e-01 : f32
    %45 = vector.broadcast %cst_15 : f32 to vector<8x96xf32>
    %46 = arith.mulf %45, %44 : vector<8x96xf32>
    %cst_16 = arith.constant 5.000000e-01 : f32
    %47 = vector.broadcast %cst_16 : f32 to vector<8x96xf32>
    %48 = arith.addf %46, %47 : vector<8x96xf32>
    %49 = vector.extract_strided_slice %48 {offsets = [0, 0], sizes = [8, 32], strides = [1, 1]} : vector<8x96xf32> to vector<8x32xf32>
    %50 = vector.extract_strided_slice %48 {offsets = [0, 32], sizes = [8, 32], strides = [1, 1]} : vector<8x96xf32> to vector<8x32xf32>
    %51 = vector.extract_strided_slice %48 {offsets = [0, 64], sizes = [8, 32], strides = [1, 1]} : vector<8x96xf32> to vector<8x32xf32>
    %52 = vector.extract_strided_slice %43 {offsets = [0, 96], sizes = [8, 32], strides = [1, 1]} : vector<8x128xf32> to vector<8x32xf32>
    %53 = arith.mulf %50, %34 : vector<8x32xf32>
    %54 = arith.mulf %49, %52 : vector<8x32xf32>
    %55 = arith.addf %53, %54 : vector<8x32xf32>
    %56 = math.tanh %55 : vector<8x32xf32>
    %57 = arith.mulf %51, %56 : vector<8x32xf32>
    %58 = vector.extract_strided_slice %6 {offsets = [16, 0], sizes = [8, 128], strides = [1, 1]} : vector<64x128xf32> to vector<8x128xf32>
    %59 = arith.truncf %57 : vector<8x32xf32> to vector<8x32xbf16>
    %cst_17 = arith.constant dense<0.000000e+00> : vector<8x128xf32>
    %60 = tpu.matmul %59, %9, %cst_17 {dimension_numbers = #tpu.dot_dimension_numbers<[1], [0], [0], [1], [0, 0, 1, 1], [], []>} : vector<8x32xbf16>, vector<32x128xbf16>, vector<8x128xf32> -> vector<8x128xf32>
    %61 = arith.addf %58, %60 : vector<8x128xf32>
    %62 = vector.broadcast %15 : vector<1x128xf32> to vector<8x128xf32>
    %63 = arith.mulf %61, %62 : vector<8x128xf32>
    %64 = math.tanh %63 : vector<8x128xf32>
    %65 = vector.extract_strided_slice %64 {offsets = [0, 0], sizes = [8, 96], strides = [1, 1]} : vector<8x128xf32> to vector<8x96xf32>
    %cst_18 = arith.constant 5.000000e-01 : f32
    %66 = vector.broadcast %cst_18 : f32 to vector<8x96xf32>
    %67 = arith.mulf %66, %65 : vector<8x96xf32>
    %cst_19 = arith.constant 5.000000e-01 : f32
    %68 = vector.broadcast %cst_19 : f32 to vector<8x96xf32>
    %69 = arith.addf %67, %68 : vector<8x96xf32>
    %70 = vector.extract_strided_slice %69 {offsets = [0, 0], sizes = [8, 32], strides = [1, 1]} : vector<8x96xf32> to vector<8x32xf32>
    %71 = vector.extract_strided_slice %69 {offsets = [0, 32], sizes = [8, 32], strides = [1, 1]} : vector<8x96xf32> to vector<8x32xf32>
    %72 = vector.extract_strided_slice %69 {offsets = [0, 64], sizes = [8, 32], strides = [1, 1]} : vector<8x96xf32> to vector<8x32xf32>
    %73 = vector.extract_strided_slice %64 {offsets = [0, 96], sizes = [8, 32], strides = [1, 1]} : vector<8x128xf32> to vector<8x32xf32>
    %74 = arith.mulf %71, %55 : vector<8x32xf32>
    %75 = arith.mulf %70, %73 : vector<8x32xf32>
    %76 = arith.addf %74, %75 : vector<8x32xf32>
    %77 = math.tanh %76 : vector<8x32xf32>
    %78 = arith.mulf %72, %77 : vector<8x32xf32>
    %79 = vector.extract_strided_slice %6 {offsets = [24, 0], sizes = [8, 128], strides = [1, 1]} : vector<64x128xf32> to vector<8x128xf32>
    %80 = arith.truncf %78 : vector<8x32xf32> to vector<8x32xbf16>
    %cst_20 = arith.constant dense<0.000000e+00> : vector<8x128xf32>
    %81 = tpu.matmul %80, %9, %cst_20 {dimension_numbers = #tpu.dot_dimension_numbers<[1], [0], [0], [1], [0, 0, 1, 1], [], []>} : vector<8x32xbf16>, vector<32x128xbf16>, vector<8x128xf32> -> vector<8x128xf32>
    %82 = arith.addf %79, %81 : vector<8x128xf32>
    %83 = vector.broadcast %15 : vector<1x128xf32> to vector<8x128xf32>
    %84 = arith.mulf %82, %83 : vector<8x128xf32>
    %85 = math.tanh %84 : vector<8x128xf32>
    %86 = vector.extract_strided_slice %85 {offsets = [0, 0], sizes = [8, 96], strides = [1, 1]} : vector<8x128xf32> to vector<8x96xf32>
    %cst_21 = arith.constant 5.000000e-01 : f32
    %87 = vector.broadcast %cst_21 : f32 to vector<8x96xf32>
    %88 = arith.mulf %87, %86 : vector<8x96xf32>
    %cst_22 = arith.constant 5.000000e-01 : f32
    %89 = vector.broadcast %cst_22 : f32 to vector<8x96xf32>
    %90 = arith.addf %88, %89 : vector<8x96xf32>
    %91 = vector.extract_strided_slice %90 {offsets = [0, 0], sizes = [8, 32], strides = [1, 1]} : vector<8x96xf32> to vector<8x32xf32>
    %92 = vector.extract_strided_slice %90 {offsets = [0, 32], sizes = [8, 32], strides = [1, 1]} : vector<8x96xf32> to vector<8x32xf32>
    %93 = vector.extract_strided_slice %90 {offsets = [0, 64], sizes = [8, 32], strides = [1, 1]} : vector<8x96xf32> to vector<8x32xf32>
    %94 = vector.extract_strided_slice %85 {offsets = [0, 96], sizes = [8, 32], strides = [1, 1]} : vector<8x128xf32> to vector<8x32xf32>
    %95 = arith.mulf %92, %76 : vector<8x32xf32>
    %96 = arith.mulf %91, %94 : vector<8x32xf32>
    %97 = arith.addf %95, %96 : vector<8x32xf32>
    %98 = math.tanh %97 : vector<8x32xf32>
    %99 = arith.mulf %93, %98 : vector<8x32xf32>
    %100 = vector.extract_strided_slice %6 {offsets = [32, 0], sizes = [8, 128], strides = [1, 1]} : vector<64x128xf32> to vector<8x128xf32>
    %101 = arith.truncf %99 : vector<8x32xf32> to vector<8x32xbf16>
    %cst_23 = arith.constant dense<0.000000e+00> : vector<8x128xf32>
    %102 = tpu.matmul %101, %9, %cst_23 {dimension_numbers = #tpu.dot_dimension_numbers<[1], [0], [0], [1], [0, 0, 1, 1], [], []>} : vector<8x32xbf16>, vector<32x128xbf16>, vector<8x128xf32> -> vector<8x128xf32>
    %103 = arith.addf %100, %102 : vector<8x128xf32>
    %104 = vector.broadcast %15 : vector<1x128xf32> to vector<8x128xf32>
    %105 = arith.mulf %103, %104 : vector<8x128xf32>
    %106 = math.tanh %105 : vector<8x128xf32>
    %107 = vector.extract_strided_slice %106 {offsets = [0, 0], sizes = [8, 96], strides = [1, 1]} : vector<8x128xf32> to vector<8x96xf32>
    %cst_24 = arith.constant 5.000000e-01 : f32
    %108 = vector.broadcast %cst_24 : f32 to vector<8x96xf32>
    %109 = arith.mulf %108, %107 : vector<8x96xf32>
    %cst_25 = arith.constant 5.000000e-01 : f32
    %110 = vector.broadcast %cst_25 : f32 to vector<8x96xf32>
    %111 = arith.addf %109, %110 : vector<8x96xf32>
    %112 = vector.extract_strided_slice %111 {offsets = [0, 0], sizes = [8, 32], strides = [1, 1]} : vector<8x96xf32> to vector<8x32xf32>
    %113 = vector.extract_strided_slice %111 {offsets = [0, 32], sizes = [8, 32], strides = [1, 1]} : vector<8x96xf32> to vector<8x32xf32>
    %114 = vector.extract_strided_slice %111 {offsets = [0, 64], sizes = [8, 32], strides = [1, 1]} : vector<8x96xf32> to vector<8x32xf32>
    %115 = vector.extract_strided_slice %106 {offsets = [0, 96], sizes = [8, 32], strides = [1, 1]} : vector<8x128xf32> to vector<8x32xf32>
    %116 = arith.mulf %113, %97 : vector<8x32xf32>
    %117 = arith.mulf %112, %115 : vector<8x32xf32>
    %118 = arith.addf %116, %117 : vector<8x32xf32>
    %119 = math.tanh %118 : vector<8x32xf32>
    %120 = arith.mulf %114, %119 : vector<8x32xf32>
    %121 = vector.extract_strided_slice %6 {offsets = [40, 0], sizes = [8, 128], strides = [1, 1]} : vector<64x128xf32> to vector<8x128xf32>
    %122 = arith.truncf %120 : vector<8x32xf32> to vector<8x32xbf16>
    %cst_26 = arith.constant dense<0.000000e+00> : vector<8x128xf32>
    %123 = tpu.matmul %122, %9, %cst_26 {dimension_numbers = #tpu.dot_dimension_numbers<[1], [0], [0], [1], [0, 0, 1, 1], [], []>} : vector<8x32xbf16>, vector<32x128xbf16>, vector<8x128xf32> -> vector<8x128xf32>
    %124 = arith.addf %121, %123 : vector<8x128xf32>
    %125 = vector.broadcast %15 : vector<1x128xf32> to vector<8x128xf32>
    %126 = arith.mulf %124, %125 : vector<8x128xf32>
    %127 = math.tanh %126 : vector<8x128xf32>
    %128 = vector.extract_strided_slice %127 {offsets = [0, 0], sizes = [8, 96], strides = [1, 1]} : vector<8x128xf32> to vector<8x96xf32>
    %cst_27 = arith.constant 5.000000e-01 : f32
    %129 = vector.broadcast %cst_27 : f32 to vector<8x96xf32>
    %130 = arith.mulf %129, %128 : vector<8x96xf32>
    %cst_28 = arith.constant 5.000000e-01 : f32
    %131 = vector.broadcast %cst_28 : f32 to vector<8x96xf32>
    %132 = arith.addf %130, %131 : vector<8x96xf32>
    %133 = vector.extract_strided_slice %132 {offsets = [0, 0], sizes = [8, 32], strides = [1, 1]} : vector<8x96xf32> to vector<8x32xf32>
    %134 = vector.extract_strided_slice %132 {offsets = [0, 32], sizes = [8, 32], strides = [1, 1]} : vector<8x96xf32> to vector<8x32xf32>
    %135 = vector.extract_strided_slice %132 {offsets = [0, 64], sizes = [8, 32], strides = [1, 1]} : vector<8x96xf32> to vector<8x32xf32>
    %136 = vector.extract_strided_slice %127 {offsets = [0, 96], sizes = [8, 32], strides = [1, 1]} : vector<8x128xf32> to vector<8x32xf32>
    %137 = arith.mulf %134, %118 : vector<8x32xf32>
    %138 = arith.mulf %133, %136 : vector<8x32xf32>
    %139 = arith.addf %137, %138 : vector<8x32xf32>
    %140 = math.tanh %139 : vector<8x32xf32>
    %141 = arith.mulf %135, %140 : vector<8x32xf32>
    %142 = vector.extract_strided_slice %6 {offsets = [48, 0], sizes = [8, 128], strides = [1, 1]} : vector<64x128xf32> to vector<8x128xf32>
    %143 = arith.truncf %141 : vector<8x32xf32> to vector<8x32xbf16>
    %cst_29 = arith.constant dense<0.000000e+00> : vector<8x128xf32>
    %144 = tpu.matmul %143, %9, %cst_29 {dimension_numbers = #tpu.dot_dimension_numbers<[1], [0], [0], [1], [0, 0, 1, 1], [], []>} : vector<8x32xbf16>, vector<32x128xbf16>, vector<8x128xf32> -> vector<8x128xf32>
    %145 = arith.addf %142, %144 : vector<8x128xf32>
    %146 = vector.broadcast %15 : vector<1x128xf32> to vector<8x128xf32>
    %147 = arith.mulf %145, %146 : vector<8x128xf32>
    %148 = math.tanh %147 : vector<8x128xf32>
    %149 = vector.extract_strided_slice %148 {offsets = [0, 0], sizes = [8, 96], strides = [1, 1]} : vector<8x128xf32> to vector<8x96xf32>
    %cst_30 = arith.constant 5.000000e-01 : f32
    %150 = vector.broadcast %cst_30 : f32 to vector<8x96xf32>
    %151 = arith.mulf %150, %149 : vector<8x96xf32>
    %cst_31 = arith.constant 5.000000e-01 : f32
    %152 = vector.broadcast %cst_31 : f32 to vector<8x96xf32>
    %153 = arith.addf %151, %152 : vector<8x96xf32>
    %154 = vector.extract_strided_slice %153 {offsets = [0, 0], sizes = [8, 32], strides = [1, 1]} : vector<8x96xf32> to vector<8x32xf32>
    %155 = vector.extract_strided_slice %153 {offsets = [0, 32], sizes = [8, 32], strides = [1, 1]} : vector<8x96xf32> to vector<8x32xf32>
    %156 = vector.extract_strided_slice %153 {offsets = [0, 64], sizes = [8, 32], strides = [1, 1]} : vector<8x96xf32> to vector<8x32xf32>
    %157 = vector.extract_strided_slice %148 {offsets = [0, 96], sizes = [8, 32], strides = [1, 1]} : vector<8x128xf32> to vector<8x32xf32>
    %158 = arith.mulf %155, %139 : vector<8x32xf32>
    %159 = arith.mulf %154, %157 : vector<8x32xf32>
    %160 = arith.addf %158, %159 : vector<8x32xf32>
    %161 = math.tanh %160 : vector<8x32xf32>
    %162 = arith.mulf %156, %161 : vector<8x32xf32>
    %163 = vector.extract_strided_slice %6 {offsets = [56, 0], sizes = [8, 128], strides = [1, 1]} : vector<64x128xf32> to vector<8x128xf32>
    %164 = arith.truncf %162 : vector<8x32xf32> to vector<8x32xbf16>
    %cst_32 = arith.constant dense<0.000000e+00> : vector<8x128xf32>
    %165 = tpu.matmul %164, %9, %cst_32 {dimension_numbers = #tpu.dot_dimension_numbers<[1], [0], [0], [1], [0, 0, 1, 1], [], []>} : vector<8x32xbf16>, vector<32x128xbf16>, vector<8x128xf32> -> vector<8x128xf32>
    %166 = arith.addf %163, %165 : vector<8x128xf32>
    %167 = vector.broadcast %15 : vector<1x128xf32> to vector<8x128xf32>
    %168 = arith.mulf %166, %167 : vector<8x128xf32>
    %169 = math.tanh %168 : vector<8x128xf32>
    %170 = vector.extract_strided_slice %169 {offsets = [0, 0], sizes = [8, 96], strides = [1, 1]} : vector<8x128xf32> to vector<8x96xf32>
    %cst_33 = arith.constant 5.000000e-01 : f32
    %171 = vector.broadcast %cst_33 : f32 to vector<8x96xf32>
    %172 = arith.mulf %171, %170 : vector<8x96xf32>
    %cst_34 = arith.constant 5.000000e-01 : f32
    %173 = vector.broadcast %cst_34 : f32 to vector<8x96xf32>
    %174 = arith.addf %172, %173 : vector<8x96xf32>
    %175 = vector.extract_strided_slice %174 {offsets = [0, 0], sizes = [8, 32], strides = [1, 1]} : vector<8x96xf32> to vector<8x32xf32>
    %176 = vector.extract_strided_slice %174 {offsets = [0, 32], sizes = [8, 32], strides = [1, 1]} : vector<8x96xf32> to vector<8x32xf32>
    %177 = vector.extract_strided_slice %174 {offsets = [0, 64], sizes = [8, 32], strides = [1, 1]} : vector<8x96xf32> to vector<8x32xf32>
    %178 = vector.extract_strided_slice %169 {offsets = [0, 96], sizes = [8, 32], strides = [1, 1]} : vector<8x128xf32> to vector<8x32xf32>
    %179 = arith.mulf %176, %160 : vector<8x32xf32>
    %180 = arith.mulf %175, %178 : vector<8x32xf32>
    %181 = arith.addf %179, %180 : vector<8x32xf32>
    %182 = math.tanh %181 : vector<8x32xf32>
    %183 = arith.mulf %177, %182 : vector<8x32xf32>
    %cst_35 = arith.constant dense<0.000000e+00> : vector<32xf32>
    %184 = vector.multi_reduction <add>, %183, %cst_35 [0] : vector<8x32xf32> to vector<32xf32>
    %185 = vector.shape_cast %184 : vector<32xf32> to vector<1x32xf32>
    %cst_36 = arith.constant 1.250000e-01 : f32
    %186 = vector.broadcast %cst_36 : f32 to vector<1x32xf32>
    %187 = arith.mulf %185, %186 : vector<1x32xf32>
    %c0_37 = arith.constant 0 : index
    %c0_38 = arith.constant 0 : index
    %188 = vector.load %arg4[%c0_37, %c0_38] : memref<1x32xf32, #tpu.memory_space<vmem>>, vector<1x32xf32>
    tpu.vector_store %arg4[%c0_37, %c0_38], %187 {strides = array<i32>} : memref<1x32xf32, #tpu.memory_space<vmem>>, vector<1x32xf32>,
    %cst_39 = arith.constant dense<0.000000e+00> : vector<32xf32>
    %189 = vector.multi_reduction <add>, %181, %cst_39 [0] : vector<8x32xf32> to vector<32xf32>
    %190 = vector.shape_cast %189 : vector<32xf32> to vector<1x32xf32>
    %cst_40 = arith.constant 1.250000e-01 : f32
    %191 = vector.broadcast %cst_40 : f32 to vector<1x32xf32>
    %192 = arith.mulf %190, %191 : vector<1x32xf32>
    %c0_41 = arith.constant 0 : index
    %c0_42 = arith.constant 0 : index
    %193 = vector.load %arg5[%c0_41, %c0_42] : memref<1x32xf32, #tpu.memory_space<vmem>>, vector<1x32xf32>
    tpu.vector_store %arg5[%c0_41, %c0_42], %192 {strides = array<i32>} : memref<1x32xf32, #tpu.memory_space<vmem>>, vector<1x32xf32>,
    return
  }
}

</mosaic_0001>

<llo_original>
// kernel: tpu_custom_call.1
$region0: #{tpu_custom_call.1}
  #allocation0 [shape = 'u32[]', space=smem, size = 0x4, offset = 0x4, fixed_abs, tag = 'smem constant byte address 0x4 - core index']
  #allocation1 [shape = 'u32[144,128]{1,0:T(1,128)}', space=vmem, size = 0x12000, scoped, tag = 'internal scratch']
  %s0 = inlined_call_operand.vmem [shape: f32[64,16], index: 0, kind: input, shape index: {}]
  %s1 = inlined_call_operand.vmem [shape: bf16[16,128], index: 1, kind: input, shape index: {}]
  %s2 = inlined_call_operand.vmem [shape: bf16[32,128], index: 2, kind: input, shape index: {}]
  %s3 = inlined_call_operand.vmem [shape: f32[1,128], index: 3, kind: input, shape index: {}]
  %s4 = inlined_call_operand.hbm [shape: f32[1,32], index: 4, kind: output, shape index: {0}]
  %s5 = inlined_call_operand.hbm [shape: f32[1,32], index: 5, kind: output, shape index: {1}]
  %6 = xla_tuple %s4, %s5
  %s7 = sld [smem:[#allocation0]]
  $region34: #{tpu_custom_call.1} parent=0
    _
  %s9 = ssub.s32 1, %s7
  %s10 = scalar_select 0, %s9, %s7
  $region1: #{tpu_custom_call.1} parent=0
    #allocation2 [shape = 'u8[512]{0}', space=vmem, size = 0x400, scoped, tag = 'output window, operand 0, single buffered']
    #allocation3 [shape = 's32[1]{0}', space=sflag, size = 0x4, scoped, tag = 'scoped memory for tpu_custom_call.1']
    #allocation4 [shape = 'u8[512]{0}', space=vmem, size = 0x400, scoped, tag = 'output window, operand 1, single buffered']
    #allocation5 [shape = 's32[1]{0}', space=sflag, size = 0x4, scoped, tag = 'scoped memory for tpu_custom_call.1']
    %11 = vsyncpa [#allocation3], 0
    %12 = vsyncpa [#allocation5], 0
    // Predicated region
    $region2: #{tpu_custom_call.1} parent=1 // pred_check
      _
    $region3: #{tpu_custom_call.1} parent=1 // pred_check_branch
      %14 = sbr.rel (0) target = $region5
    $region4: #{tpu_custom_call.1} parent=1 // pred_region
      _
    $region5: #{tpu_custom_call.1} parent=1 // pred_fallthru
      _
    // Predicated region
    $region6: #{tpu_custom_call.1} parent=1 // pred_check
      _
    $region7: #{tpu_custom_call.1} parent=1 // pred_check_branch
      %16 = sbr.rel (0) target = $region9
    $region8: #{tpu_custom_call.1} parent=1 // pred_region
      _
    $region9: #{tpu_custom_call.1} parent=1 // pred_fallthru
      _
    // Predicated region
    $region10: #{tpu_custom_call.1} parent=1 // pred_check
      _
    $region11: #{tpu_custom_call.1} parent=1 // pred_check_branch
      %18 = sbr.rel (0) target = $region13
    $region12: #{tpu_custom_call.1} parent=1 // pred_region
      _
    $region13: #{tpu_custom_call.1} parent=1 // pred_fallthru
      _
    // Predicated region
    $region14: #{tpu_custom_call.1} parent=1 // pred_check
      _
    $region15: #{tpu_custom_call.1} parent=1 // pred_check_branch
      %20 = sbr.rel (0) target = $region17
    $region16: #{tpu_custom_call.1} parent=1 // pred_region
      _
    $region17: #{tpu_custom_call.1} parent=1 // pred_fallthru
      _
    %v22 = vld [vmem:[%s0] sm:$0xff]
    %v23 = vld [vmem:[%s0 + $0x8] sm:$0xff]
    %v24 = vld [vmem:[%s0 + $0x10] sm:$0xff]
    %v25 = vld [vmem:[%s0 + $0x18] sm:$0xff]
    %v26 = vld [vmem:[%s0 + $0x20] sm:$0xff]
    %v27 = vld [vmem:[%s0 + $0x28] sm:$0xff]
    %v28 = vld [vmem:[%s0 + $0x30] sm:$0xff]
    %v29 = vld [vmem:[%s0 + $0x38] sm:$0xff]
    %v30 = vpack.c.bf16 %v23, %v22
    %v31 = vpack.c.bf16 %v25, %v24
    %v32 = vpack.c.bf16 %v27, %v26
    %v33 = vpack.c.bf16 %v29, %v28
    %v34 = vld [vmem:[%s1] sm:$0xf]
    %v35 = vld [vmem:[%s1 + $0x4] sm:$0xf]
    %v36 = vld [vmem:[%s3] sm:$0x1]
    %v38 = vlaneseq
    %v39 = vshrl.u32 %v38, 7
    %v40 = vsub.s32 0, %v39
    %v41 = vrot.slane %v36, %v40
    %v45 = vunpack.c.l.b16 %v34
    %v46 = vunpack.c.l.b16 %v35
    %v47 = vpack.c.b16 %v46, %v45
    %vm49 = vcmask 130048
    %v51 = vsel %vm49, %v30, 0
    %v54 = vsel %vm49, %v31, 0
    %v57 = vsel %vm49, %v32, 0
    %v60 = vsel %vm49, %v33, 0
    %62 = vmatprep.subr.bf16.mxu0 0
    %63 = vmatpush1.bf16.msra.mxu0 %v47
    %64 = vmatprep.subr.bf16.mxu0 0
    %65 = vmatpush1.bf16.msra.mxu0 0
    %66 = vmatprep.subr.bf16.mxu0 0
    %67 = vmatpush1.bf16.msra.mxu0 0
    %68 = vmatprep.subr.bf16.mxu0 0
    %69 = vmatpush1.bf16.msra.mxu0 0
    %70 = vmatprep.subr.bf16.mxu0 0
    %71 = vmatpush1.bf16.msra.mxu0 0
    %72 = vmatprep.subr.bf16.mxu0 0
    %73 = vmatpush1.bf16.msra.mxu0 0
    %74 = vmatprep.subr.bf16.mxu0 0
    %75 = vmatpush1.bf16.msra.mxu0 0
    %76 = vmatprep.subr.bf16.mxu0 0
    %77 = vmatpush1.bf16.msra.mxu0 0
    %78 = vmatprep.subr.bf16.mxu0 0
    %79 = vmatpush1.bf16.msra.mxu0 0
    %80 = vmatprep.subr.bf16.mxu0 0
    %81 = vmatpush1.bf16.msra.mxu0 0
    %82 = vmatprep.subr.bf16.mxu0 0
    %83 = vmatpush1.bf16.msra.mxu0 0
    %84 = vmatprep.subr.bf16.mxu0 0
    %85 = vmatpush1.bf16.msra.mxu0 0
    %86 = vmatprep.subr.bf16.mxu0 0
    %87 = vmatpush1.bf16.msra.mxu0 0
    %88 = vmatprep.subr.bf16.mxu0 0
    %89 = vmatpush1.bf16.msra.mxu0 0
    %90 = vmatprep.subr.bf16.mxu0 0
    %91 = vmatpush1.bf16.msra.mxu0 0
    %92 = vmatprep.subr.bf16.mxu0 0
    %93 = vmatpush1.bf16.msra.mxu0 0
    %94 = vmatprep.mubr.bf16.mxu0 0
    %95 = vmatmul.mubr.bf16.gmra.mrb[0].mxu0 %v51
    %v96 = vpop.f32.mrb[0].mxu0
    %v97 = vadd.f32 %v41, %v96
    %v98 = vpop.f32.mrb[0].mxu0
    %v99 = vpop.f32.mrb[0].mxu0
    %v100 = vadd.f32 %v41, %v99
    %v101 = vpop.f32.mrb[0].mxu0
    %102 = vmatprep.mubr.bf16.mxu0 0
    %103 = vmatmul.mubr.bf16.gmra.mrb[0].mxu0 %v54
    %v104 = vpop.f32.mrb[0].mxu0
    %v105 = vadd.f32 %v41, %v104
    %v106 = vpop.f32.mrb[0].mxu0
    %v107 = vpop.f32.mrb[0].mxu0
    %v108 = vadd.f32 %v41, %v107
    %v109 = vpop.f32.mrb[0].mxu0
    %110 = vmatprep.mubr.bf16.mxu0 0
    %111 = vmatmul.mubr.bf16.gmra.mrb[0].mxu0 %v57
    %v112 = vpop.f32.mrb[0].mxu0
    %v113 = vadd.f32 %v41, %v112
    %v114 = vpop.f32.mrb[0].mxu0
    %v115 = vpop.f32.mrb[0].mxu0
    %v116 = vadd.f32 %v41, %v115
    %v117 = vpop.f32.mrb[0].mxu0
    %118 = vmatprep.mubr.bf16.mxu0 0
    %119 = vmatmul.mubr.bf16.gmra.mrb[0].mxu0 %v60
    %v120 = vpop.f32.mrb[0].mxu0
    %v121 = vadd.f32 %v41, %v120
    %v122 = vpop.f32.mrb[0].mxu0
    %v123 = vpop.f32.mrb[0].mxu0
    %v124 = vadd.f32 %v41, %v123
    %v125 = vpop.f32.mrb[0].mxu0
    %126 = vdwg.mxu0
    %v127 = vld [vmem:[%s2] sm:$0xf]
    %v128 = vld [vmem:[%s2 + $0x4] sm:$0xf]
    %v129 = vld [vmem:[%s2 + $0x8] sm:$0xf]
    %v130 = vld [vmem:[%s2 + $0xc] sm:$0xf]
    %v131 = vlaneseq
    %v132 = vand.u32 %v131, 127
    %vm133 = vcmp.lt.s32.totalorder %v132, 96
    %v134 = vsel %vm133, 0.5, 1.0
    %v139 = vunpack.c.l.b16 %v127
    %v140 = vunpack.c.l.b16 %v128
    %v141 = vunpack.c.l.b16 %v129
    %v142 = vunpack.c.l.b16 %v130
    %v143 = vpack.c.b16 %v140, %v139
    %v144 = vpack.c.b16 %v142, %v141
    %vm147 = vcmask 261120
    %v149 = vsel %vm147, 0, 0
    %151 = vmatprep.subr.bf16.mxu0 0
    %152 = vmatpush1.bf16.msra.mxu0 %v143
    %153 = vmatprep.subr.bf16.mxu0 0
    %154 = vmatpush1.bf16.msra.mxu0 %v144
    %155 = vmatprep.subr.bf16.mxu0 0
    %156 = vmatpush1.bf16.msra.mxu0 0
    %157 = vmatprep.subr.bf16.mxu0 0
    %158 = vmatpush1.bf16.msra.mxu0 0
    %159 = vmatprep.subr.bf16.mxu0 0
    %160 = vmatpush1.bf16.msra.mxu0 0
    %161 = vmatprep.subr.bf16.mxu0 0
    %162 = vmatpush1.bf16.msra.mxu0 0
    %163 = vmatprep.subr.bf16.mxu0 0
    %164 = vmatpush1.bf16.msra.mxu0 0
    %165 = vmatprep.subr.bf16.mxu0 0
    %166 = vmatpush1.bf16.msra.mxu0 0
    %167 = vmatprep.subr.bf16.mxu0 0
    %168 = vmatpush1.bf16.msra.mxu0 0
    %169 = vmatprep.subr.bf16.mxu0 0
    %170 = vmatpush1.bf16.msra.mxu0 0
    %171 = vmatprep.subr.bf16.mxu0 0
    %172 = vmatpush1.bf16.msra.mxu0 0
    %173 = vmatprep.subr.bf16.mxu0 0
    %174 = vmatpush1.bf16.msra.mxu0 0
    %175 = vmatprep.subr.bf16.mxu0 0
    %176 = vmatpush1.bf16.msra.mxu0 0
    %177 = vmatprep.subr.bf16.mxu0 0
    %178 = vmatpush1.bf16.msra.mxu0 0
    %179 = vmatprep.subr.bf16.mxu0 0
    %180 = vmatpush1.bf16.msra.mxu0 0
    %181 = vmatprep.subr.bf16.mxu0 0
    %182 = vmatpush1.bf16.msra.mxu0 0
    %183 = vmatprep.mubr.bf16.mxu0 0
    %184 = vmatmul.mubr.bf16.gmra.mrb[0].mxu0 %v149
    %v185 = vpop.f32.mrb[0].mxu0
    %v186 = vadd.f32 0.0, %v185
    %v187 = vpop.f32.mrb[0].mxu0
    %v188 = vpop.f32.mrb[0].mxu0
    %v189 = vpop.f32.mrb[0].mxu0
    %190 = vdwg.mxu0
    %v191 = vadd.f32 %v97, %v186
    %v192 = vmul.f32 %v191, %v134
    %v193 = vtanh.pop %v192
    %v194 = vmul.f32 %v193, 0.5
    %v195 = vadd.f32 %v194, 0.5
    %v196 = vmul.f32 %v195, 0.0
    %198 = vrot.lane.b32.xlu0 %v193, 32
    %v199 = vpop.permute.xlu0 %198
    %v201 = vmul.f32 %v195, %v199
    %203 = vrot.lane.b32.xlu0 %v201, 32
    %v204 = vpop.permute.xlu0 %203
    %v206 = vadd.f32 %v196, %v204
    %v207 = vtanh.pop %v206
    %209 = vrot.lane.b32.xlu0 %v207, 32
    %v210 = vpop.permute.xlu0 %209
    %v212 = vmul.f32 %v195, %v210
    %v213 = vpack.c.bf16 %v212, %v212
    %215 = vrot.lane.b32.xlu0 %v213, 64
    %v216 = vpop.permute.xlu0 %215
    %v218 = vsel %vm147, %v216, 0
    %220 = vmatprep.subr.bf16.mxu0 0
    %221 = vmatpush1.bf16.msra.mxu0 %v143
    %222 = vmatprep.subr.bf16.mxu0 0
    %223 = vmatpush1.bf16.msra.mxu0 %v144
    %224 = vmatprep.subr.bf16.mxu0 0
    %225 = vmatpush1.bf16.msra.mxu0 0
    %226 = vmatprep.subr.bf16.mxu0 0
    %227 = vmatpush1.bf16.msra.mxu0 0
    %228 = vmatprep.subr.bf16.mxu0 0
    %229 = vmatpush1.bf16.msra.mxu0 0
    %230 = vmatprep.subr.bf16.mxu0 0
    %231 = vmatpush1.bf16.msra.mxu0 0
    %232 = vmatprep.subr.bf16.mxu0 0
    %233 = vmatpush1.bf16.msra.mxu0 0
    %234 = vmatprep.subr.bf16.mxu0 0
    %235 = vmatpush1.bf16.msra.mxu0 0
    %236 = vmatprep.subr.bf16.mxu0 0
    %237 = vmatpush1.bf16.msra.mxu0 0
    %238 = vmatprep.subr.bf16.mxu0 0
    %239 = vmatpush1.bf16.msra.mxu0 0
    %240 = vmatprep.subr.bf16.mxu0 0
    %241 = vmatpush1.bf16.msra.mxu0 0
    %242 = vmatprep.subr.bf16.mxu0 0
    %243 = vmatpush1.bf16.msra.mxu0 0
    %244 = vmatprep.subr.bf16.mxu0 0
    %245 = vmatpush1.bf16.msra.mxu0 0
    %246 = vmatprep.subr.bf16.mxu0 0
    %247 = vmatpush1.bf16.msra.mxu0 0
    %248 = vmatprep.subr.bf16.mxu0 0
    %249 = vmatpush1.bf16.msra.mxu0 0
    %250 = vmatprep.subr.bf16.mxu0 0
    %251 = vmatpush1.bf16.msra.mxu0 0
    %252 = vmatprep.mubr.bf16.mxu0 0
    %253 = vmatmul.mubr.bf16.gmra.mrb[0].mxu0 %v218
    %v254 = vpop.f32.mrb[0].mxu0
    %v255 = vadd.f32 0.0, %v254
    %v256 = vpop.f32.mrb[0].mxu0
    %v257 = vpop.f32.mrb[0].mxu0
    %v258 = vpop.f32.mrb[0].mxu0
    %259 = vdwg.mxu0
    %v260 = vadd.f32 %v100, %v255
    %v261 = vmul.f32 %v260, %v134
    %v262 = vtanh.pop %v261
    %v263 = vmul.f32 %v262, 0.5
    %v264 = vadd.f32 %v263, 0.5
    %v265 = vmul.f32 %v264, %v206
    %267 = vrot.lane.b32.xlu0 %v262, 32
    %v268 = vpop.permute.xlu0 %267
    %v270 = vmul.f32 %v264, %v268
    %272 = vrot.lane.b32.xlu0 %v270, 32
    %v273 = vpop.permute.xlu0 %272
    %v275 = vadd.f32 %v265, %v273
    %v276 = vtanh.pop %v275
    %278 = vrot.lane.b32.xlu0 %v276, 32
    %v279 = vpop.permute.xlu0 %278
    %v281 = vmul.f32 %v264, %v279
    %v282 = vpack.c.bf16 %v281, %v281
    %284 = vrot.lane.b32.xlu0 %v282, 64
    %v285 = vpop.permute.xlu0 %284
    %v287 = vsel %vm147, %v285, 0
    %289 = vmatprep.subr.bf16.mxu0 0
    %290 = vmatpush1.bf16.msra.mxu0 %v143
    %291 = vmatprep.subr.bf16.mxu0 0
    %292 = vmatpush1.bf16.msra.mxu0 %v144
    %293 = vmatprep.subr.bf16.mxu0 0
    %294 = vmatpush1.bf16.msra.mxu0 0
    %295 = vmatprep.subr.bf16.mxu0 0
    %296 = vmatpush1.bf16.msra.mxu0 0
    %297 = vmatprep.subr.bf16.mxu0 0
    %298 = vmatpush1.bf16.msra.mxu0 0
    %299 = vmatprep.subr.bf16.mxu0 0
    %300 = vmatpush1.bf16.msra.mxu0 0
    %301 = vmatprep.subr.bf16.mxu0 0
    %302 = vmatpush1.bf16.msra.mxu0 0
    %303 = vmatprep.subr.bf16.mxu0 0
    %304 = vmatpush1.bf16.msra.mxu0 0
    %305 = vmatprep.subr.bf16.mxu0 0
    %306 = vmatpush1.bf16.msra.mxu0 0
    %307 = vmatprep.subr.bf16.mxu0 0
    %308 = vmatpush1.bf16.msra.mxu0 0
    %309 = vmatprep.subr.bf16.mxu0 0
    %310 = vmatpush1.bf16.msra.mxu0 0
    %311 = vmatprep.subr.bf16.mxu0 0
    %312 = vmatpush1.bf16.msra.mxu0 0
    %313 = vmatprep.subr.bf16.mxu0 0
    %314 = vmatpush1.bf16.msra.mxu0 0
    %315 = vmatprep.subr.bf16.mxu0 0
    %316 = vmatpush1.bf16.msra.mxu0 0
    %317 = vmatprep.subr.bf16.mxu0 0
    %318 = vmatpush1.bf16.msra.mxu0 0
    %319 = vmatprep.subr.bf16.mxu0 0
    %320 = vmatpush1.bf16.msra.mxu0 0
    %321 = vmatprep.mubr.bf16.mxu0 0
    %322 = vmatmul.mubr.bf16.gmra.mrb[0].mxu0 %v287
    %v323 = vpop.f32.mrb[0].mxu0
    %v324 = vadd.f32 0.0, %v323
    %v325 = vpop.f32.mrb[0].mxu0
    %v326 = vpop.f32.mrb[0].mxu0
    %v327 = vpop.f32.mrb[0].mxu0
    %328 = vdwg.mxu0
    %v329 = vadd.f32 %v105, %v324
    %v330 = vmul.f32 %v329, %v134
    %v331 = vtanh.pop %v330
    %v332 = vmul.f32 %v331, 0.5
    %v333 = vadd.f32 %v332, 0.5
    %v334 = vmul.f32 %v333, %v275
    %336 = vrot.lane.b32.xlu0 %v331, 32
    %v337 = vpop.permute.xlu0 %336
    %v339 = vmul.f32 %v333, %v337
    %341 = vrot.lane.b32.xlu0 %v339, 32
    %v342 = vpop.permute.xlu0 %341
    %v344 = vadd.f32 %v334, %v342
    %v345 = vtanh.pop %v344
    %347 = vrot.lane.b32.xlu0 %v345, 32
    %v348 = vpop.permute.xlu0 %347
    %v350 = vmul.f32 %v333, %v348
    %v351 = vpack.c.bf16 %v350, %v350
    %353 = vrot.lane.b32.xlu0 %v351, 64
    %v354 = vpop.permute.xlu0 %353
    %v356 = vsel %vm147, %v354, 0
    %358 = vmatprep.subr.bf16.mxu0 0
    %359 = vmatpush1.bf16.msra.mxu0 %v143
    %360 = vmatprep.subr.bf16.mxu0 0
    %361 = vmatpush1.bf16.msra.mxu0 %v144
    %362 = vmatprep.subr.bf16.mxu0 0
    %363 = vmatpush1.bf16.msra.mxu0 0
    %364 = vmatprep.subr.bf16.mxu0 0
    %365 = vmatpush1.bf16.msra.mxu0 0
    %366 = vmatprep.subr.bf16.mxu0 0
    %367 = vmatpush1.bf16.msra.mxu0 0
    %368 = vmatprep.subr.bf16.mxu0 0
    %369 = vmatpush1.bf16.msra.mxu0 0
    %370 = vmatprep.subr.bf16.mxu0 0
    %371 = vmatpush1.bf16.msra.mxu0 0
    %372 = vmatprep.subr.bf16.mxu0 0
    %373 = vmatpush1.bf16.msra.mxu0 0
    %374 = vmatprep.subr.bf16.mxu0 0
    %375 = vmatpush1.bf16.msra.mxu0 0
    %376 = vmatprep.subr.bf16.mxu0 0
    %377 = vmatpush1.bf16.msra.mxu0 0
    %378 = vmatprep.subr.bf16.mxu0 0
    %379 = vmatpush1.bf16.msra.mxu0 0
    %380 = vmatprep.subr.bf16.mxu0 0
    %381 = vmatpush1.bf16.msra.mxu0 0
    %382 = vmatprep.subr.bf16.mxu0 0
    %383 = vmatpush1.bf16.msra.mxu0 0
    %384 = vmatprep.subr.bf16.mxu0 0
    %385 = vmatpush1.bf16.msra.mxu0 0
    %386 = vmatprep.subr.bf16.mxu0 0
    %387 = vmatpush1.bf16.msra.mxu0 0
    %388 = vmatprep.subr.bf16.mxu0 0
    %389 = vmatpush1.bf16.msra.mxu0 0
    %390 = vmatprep.mubr.bf16.mxu0 0
    %391 = vmatmul.mubr.bf16.gmra.mrb[0].mxu0 %v356
    %v392 = vpop.f32.mrb[0].mxu0
    %v393 = vadd.f32 0.0, %v392
    %v394 = vpop.f32.mrb[0].mxu0
    %v395 = vpop.f32.mrb[0].mxu0
    %v396 = vpop.f32.mrb[0].mxu0
    %397 = vdwg.mxu0
    %v398 = vadd.f32 %v108, %v393
    %v399 = vmul.f32 %v398, %v134
    %v400 = vtanh.pop %v399
    %v401 = vmul.f32 %v400, 0.5
    %v402 = vadd.f32 %v401, 0.5
    %v403 = vmul.f32 %v402, %v344
    %405 = vrot.lane.b32.xlu0 %v400, 32
    %v406 = vpop.permute.xlu0 %405
    %v408 = vmul.f32 %v402, %v406
    %410 = vrot.lane.b32.xlu0 %v408, 32
    %v411 = vpop.permute.xlu0 %410
    %v413 = vadd.f32 %v403, %v411
    %v414 = vtanh.pop %v413
    %416 = vrot.lane.b32.xlu0 %v414, 32
    %v417 = vpop.permute.xlu0 %416
    %v419 = vmul.f32 %v402, %v417
    %v420 = vpack.c.bf16 %v419, %v419
    %422 = vrot.lane.b32.xlu0 %v420, 64
    %v423 = vpop.permute.xlu0 %422
    %v425 = vsel %vm147, %v423, 0
    %427 = vmatprep.subr.bf16.mxu0 0
    %428 = vmatpush1.bf16.msra.mxu0 %v143
    %429 = vmatprep.subr.bf16.mxu0 0
    %430 = vmatpush1.bf16.msra.mxu0 %v144
    %431 = vmatprep.subr.bf16.mxu0 0
    %432 = vmatpush1.bf16.msra.mxu0 0
    %433 = vmatprep.subr.bf16.mxu0 0
    %434 = vmatpush1.bf16.msra.mxu0 0
    %435 = vmatprep.subr.bf16.mxu0 0
    %436 = vmatpush1.bf16.msra.mxu0 0
    %437 = vmatprep.subr.bf16.mxu0 0
    %438 = vmatpush1.bf16.msra.mxu0 0
    %439 = vmatprep.subr.bf16.mxu0 0
    %440 = vmatpush1.bf16.msra.mxu0 0
    %441 = vmatprep.subr.bf16.mxu0 0
    %442 = vmatpush1.bf16.msra.mxu0 0
    %443 = vmatprep.subr.bf16.mxu0 0
    %444 = vmatpush1.bf16.msra.mxu0 0
    %445 = vmatprep.subr.bf16.mxu0 0
    %446 = vmatpush1.bf16.msra.mxu0 0
    %447 = vmatprep.subr.bf16.mxu0 0
    %448 = vmatpush1.bf16.msra.mxu0 0
    %449 = vmatprep.subr.bf16.mxu0 0
    %450 = vmatpush1.bf16.msra.mxu0 0
    %451 = vmatprep.subr.bf16.mxu0 0
    %452 = vmatpush1.bf16.msra.mxu0 0
    %453 = vmatprep.subr.bf16.mxu0 0
    %454 = vmatpush1.bf16.msra.mxu0 0
    %455 = vmatprep.subr.bf16.mxu0 0
    %456 = vmatpush1.bf16.msra.mxu0 0
    %457 = vmatprep.subr.bf16.mxu0 0
    %458 = vmatpush1.bf16.msra.mxu0 0
    %459 = vmatprep.mubr.bf16.mxu0 0
    %460 = vmatmul.mubr.bf16.gmra.mrb[0].mxu0 %v425
    %v461 = vpop.f32.mrb[0].mxu0
    %v462 = vadd.f32 0.0, %v461
    %v463 = vpop.f32.mrb[0].mxu0
    %v464 = vpop.f32.mrb[0].mxu0
    %v465 = vpop.f32.mrb[0].mxu0
    %466 = vdwg.mxu0
    %v467 = vadd.f32 %v113, %v462
    %v468 = vmul.f32 %v467, %v134
    %v469 = vtanh.pop %v468
    %v470 = vmul.f32 %v469, 0.5
    %v471 = vadd.f32 %v470, 0.5
    %v472 = vmul.f32 %v471, %v413
    %474 = vrot.lane.b32.xlu0 %v469, 32
    %v475 = vpop.permute.xlu0 %474
    %v477 = vmul.f32 %v471, %v475
    %479 = vrot.lane.b32.xlu0 %v477, 32
    %v480 = vpop.permute.xlu0 %479
    %v482 = vadd.f32 %v472, %v480
    %v483 = vtanh.pop %v482
    %485 = vrot.lane.b32.xlu0 %v483, 32
    %v486 = vpop.permute.xlu0 %485
    %v488 = vmul.f32 %v471, %v486
    %v489 = vpack.c.bf16 %v488, %v488
    %491 = vrot.lane.b32.xlu0 %v489, 64
    %v492 = vpop.permute.xlu0 %491
    %v494 = vsel %vm147, %v492, 0
    %496 = vmatprep.subr.bf16.mxu0 0
    %497 = vmatpush1.bf16.msra.mxu0 %v143
    %498 = vmatprep.subr.bf16.mxu0 0
    %499 = vmatpush1.bf16.msra.mxu0 %v144
    %500 = vmatprep.subr.bf16.mxu0 0
    %501 = vmatpush1.bf16.msra.mxu0 0
    %502 = vmatprep.subr.bf16.mxu0 0
    %503 = vmatpush1.bf16.msra.mxu0 0
    %504 = vmatprep.subr.bf16.mxu0 0
    %505 = vmatpush1.bf16.msra.mxu0 0
    %506 = vmatprep.subr.bf16.mxu0 0
    %507 = vmatpush1.bf16.msra.mxu0 0
    %508 = vmatprep.subr.bf16.mxu0 0
    %509 = vmatpush1.bf16.msra.mxu0 0
    %510 = vmatprep.subr.bf16.mxu0 0
    %511 = vmatpush1.bf16.msra.mxu0 0
    %512 = vmatprep.subr.bf16.mxu0 0
    %513 = vmatpush1.bf16.msra.mxu0 0
    %514 = vmatprep.subr.bf16.mxu0 0
    %515 = vmatpush1.bf16.msra.mxu0 0
    %516 = vmatprep.subr.bf16.mxu0 0
    %517 = vmatpush1.bf16.msra.mxu0 0
    %518 = vmatprep.subr.bf16.mxu0 0
    %519 = vmatpush1.bf16.msra.mxu0 0
    %520 = vmatprep.subr.bf16.mxu0 0
    %521 = vmatpush1.bf16.msra.mxu0 0
    %522 = vmatprep.subr.bf16.mxu0 0
    %523 = vmatpush1.bf16.msra.mxu0 0
    %524 = vmatprep.subr.bf16.mxu0 0
    %525 = vmatpush1.bf16.msra.mxu0 0
    %526 = vmatprep.subr.bf16.mxu0 0
    %527 = vmatpush1.bf16.msra.mxu0 0
    %528 = vmatprep.mubr.bf16.mxu0 0
    %529 = vmatmul.mubr.bf16.gmra.mrb[0].mxu0 %v494
    %v530 = vpop.f32.mrb[0].mxu0
    %v531 = vadd.f32 0.0, %v530
    %v532 = vpop.f32.mrb[0].mxu0
    %v533 = vpop.f32.mrb[0].mxu0
    %v534 = vpop.f32.mrb[0].mxu0
    %535 = vdwg.mxu0
    %v536 = vadd.f32 %v116, %v531
    %v537 = vmul.f32 %v536, %v134
    %v538 = vtanh.pop %v537
    %v539 = vmul.f32 %v538, 0.5
    %v540 = vadd.f32 %v539, 0.5
    %v541 = vmul.f32 %v540, %v482
    %543 = vrot.lane.b32.xlu0 %v538, 32
    %v544 = vpop.permute.xlu0 %543
    %v546 = vmul.f32 %v540, %v544
    %548 = vrot.lane.b32.xlu0 %v546, 32
    %v549 = vpop.permute.xlu0 %548
    %v551 = vadd.f32 %v541, %v549
    %v552 = vtanh.pop %v551
    %554 = vrot.lane.b32.xlu0 %v552, 32
    %v555 = vpop.permute.xlu0 %554
    %v557 = vmul.f32 %v540, %v555
    %v558 = vpack.c.bf16 %v557, %v557
    %560 = vrot.lane.b32.xlu0 %v558, 64
    %v561 = vpop.permute.xlu0 %560
    %v563 = vsel %vm147, %v561, 0
    %565 = vmatprep.subr.bf16.mxu0 0
    %566 = vmatpush1.bf16.msra.mxu0 %v143
    %567 = vmatprep.subr.bf16.mxu0 0
    %568 = vmatpush1.bf16.msra.mxu0 %v144
    %569 = vmatprep.subr.bf16.mxu0 0
    %570 = vmatpush1.bf16.msra.mxu0 0
    %571 = vmatprep.subr.bf16.mxu0 0
    %572 = vmatpush1.bf16.msra.mxu0 0
    %573 = vmatprep.subr.bf16.mxu0 0
    %574 = vmatpush1.bf16.msra.mxu0 0
    %575 = vmatprep.subr.bf16.mxu0 0
    %576 = vmatpush1.bf16.msra.mxu0 0
    %577 = vmatprep.subr.bf16.mxu0 0
    %578 = vmatpush1.bf16.msra.mxu0 0
    %579 = vmatprep.subr.bf16.mxu0 0
    %580 = vmatpush1.bf16.msra.mxu0 0
    %581 = vmatprep.subr.bf16.mxu0 0
    %582 = vmatpush1.bf16.msra.mxu0 0
    %583 = vmatprep.subr.bf16.mxu0 0
    %584 = vmatpush1.bf16.msra.mxu0 0
    %585 = vmatprep.subr.bf16.mxu0 0
    %586 = vmatpush1.bf16.msra.mxu0 0
    %587 = vmatprep.subr.bf16.mxu0 0
    %588 = vmatpush1.bf16.msra.mxu0 0
    %589 = vmatprep.subr.bf16.mxu0 0
    %590 = vmatpush1.bf16.msra.mxu0 0
    %591 = vmatprep.subr.bf16.mxu0 0
    %592 = vmatpush1.bf16.msra.mxu0 0
    %593 = vmatprep.subr.bf16.mxu0 0
    %594 = vmatpush1.bf16.msra.mxu0 0
    %595 = vmatprep.subr.bf16.mxu0 0
    %596 = vmatpush1.bf16.msra.mxu0 0
    %597 = vmatprep.mubr.bf16.mxu0 0
    %598 = vmatmul.mubr.bf16.gmra.mrb[0].mxu0 %v563
    %v599 = vpop.f32.mrb[0].mxu0
    %v600 = vadd.f32 0.0, %v599
    %v601 = vpop.f32.mrb[0].mxu0
    %v602 = vpop.f32.mrb[0].mxu0
    %v603 = vpop.f32.mrb[0].mxu0
    %604 = vdwg.mxu0
    %v605 = vadd.f32 %v121, %v600
    %v606 = vmul.f32 %v605, %v134
    %v607 = vtanh.pop %v606
    %v608 = vmul.f32 %v607, 0.5
    %v609 = vadd.f32 %v608, 0.5
    %v610 = vmul.f32 %v609, %v551
    %612 = vrot.lane.b32.xlu0 %v607, 32
    %v613 = vpop.permute.xlu0 %612
    %v615 = vmul.f32 %v609, %v613
    %617 = vrot.lane.b32.xlu0 %v615, 32
    %v618 = vpop.permute.xlu0 %617
    %v620 = vadd.f32 %v610, %v618
    %v621 = vtanh.pop %v620
    %623 = vrot.lane.b32.xlu0 %v621, 32
    %v624 = vpop.permute.xlu0 %623
    %v626 = vmul.f32 %v609, %v624
    %v627 = vpack.c.bf16 %v626, %v626
    %629 = vrot.lane.b32.xlu0 %v627, 64
    %v630 = vpop.permute.xlu0 %629
    %v632 = vsel %vm147, %v630, 0
    %634 = vmatprep.subr.bf16.mxu0 0
    %635 = vmatpush1.bf16.msra.mxu0 %v143
    %636 = vmatprep.subr.bf16.mxu0 0
    %637 = vmatpush1.bf16.msra.mxu0 %v144
    %638 = vmatprep.subr.bf16.mxu0 0
    %639 = vmatpush1.bf16.msra.mxu0 0
    %640 = vmatprep.subr.bf16.mxu0 0
    %641 = vmatpush1.bf16.msra.mxu0 0
    %642 = vmatprep.subr.bf16.mxu0 0
    %643 = vmatpush1.bf16.msra.mxu0 0
    %644 = vmatprep.subr.bf16.mxu0 0
    %645 = vmatpush1.bf16.msra.mxu0 0
    %646 = vmatprep.subr.bf16.mxu0 0
    %647 = vmatpush1.bf16.msra.mxu0 0
    %648 = vmatprep.subr.bf16.mxu0 0
    %649 = vmatpush1.bf16.msra.mxu0 0
    %650 = vmatprep.subr.bf16.mxu0 0
    %651 = vmatpush1.bf16.msra.mxu0 0
    %652 = vmatprep.subr.bf16.mxu0 0
    %653 = vmatpush1.bf16.msra.mxu0 0
    %654 = vmatprep.subr.bf16.mxu0 0
    %655 = vmatpush1.bf16.msra.mxu0 0
    %656 = vmatprep.subr.bf16.mxu0 0
    %657 = vmatpush1.bf16.msra.mxu0 0
    %658 = vmatprep.subr.bf16.mxu0 0
    %659 = vmatpush1.bf16.msra.mxu0 0
    %660 = vmatprep.subr.bf16.mxu0 0
    %661 = vmatpush1.bf16.msra.mxu0 0
    %662 = vmatprep.subr.bf16.mxu0 0
    %663 = vmatpush1.bf16.msra.mxu0 0
    %664 = vmatprep.subr.bf16.mxu0 0
    %665 = vmatpush1.bf16.msra.mxu0 0
    %666 = vmatprep.mubr.bf16.mxu0 0
    %667 = vmatmul.mubr.bf16.gmra.mrb[0].mxu0 %v632
    %v668 = vpop.f32.mrb[0].mxu0
    %v669 = vadd.f32 0.0, %v668
    %v670 = vpop.f32.mrb[0].mxu0
    %v671 = vpop.f32.mrb[0].mxu0
    %v672 = vpop.f32.mrb[0].mxu0
    %673 = vdwg.mxu0
    %v674 = vadd.f32 %v124, %v669
    %v675 = vmul.f32 %v674, %v134
    %v676 = vtanh.pop %v675
    %v677 = vmul.f32 %v676, 0.5
    %v678 = vadd.f32 %v677, 0.5
    %v679 = vmul.f32 %v678, %v620
    %681 = vrot.lane.b32.xlu0 %v676, 32
    %v682 = vpop.permute.xlu0 %681
    %v684 = vmul.f32 %v678, %v682
    %686 = vrot.lane.b32.xlu0 %v684, 32
    %v687 = vpop.permute.xlu0 %686
    %v689 = vadd.f32 %v679, %v687
    %v690 = vtanh.pop %v689
    %692 = vrot.lane.b32.xlu0 %v690, 32
    %v693 = vpop.permute.xlu0 %692
    %v695 = vmul.f32 %v678, %v693
    %vm696 = vcmask 785920
    %v697 = vsel %vm696, %v695, 0.0
    %v698 = vrot.slane %v697, 4
    %v699 = vadd.f32 %v697, %v698
    %v700 = vrot.slane %v699, 2
    %v701 = vadd.f32 %v699, %v700
    %v702 = vrot.slane %v701, 1
    %v703 = vadd.f32 %v701, %v702
    %v704 = vmul.f32 %v703, 0.125
    %706 = vrot.lane.b32.xlu0 %v704, 64
    %v707 = vpop.permute.xlu0 %706
    %vm709 = vcmask 253952
    %710 = vst.msk [vmem:[#allocation2] sm:$0x1] %vm709, %v707
    %vm711 = vcmask 523520
    %v712 = vsel %vm711, %v689, 0.0
    %v713 = vrot.slane %v712, 4
    %v714 = vadd.f32 %v712, %v713
    %v715 = vrot.slane %v714, 2
    %v716 = vadd.f32 %v714, %v715
    %v717 = vrot.slane %v716, 1
    %v718 = vadd.f32 %v716, %v717
    %v719 = vmul.f32 %v718, 0.125
    %721 = vrot.lane.b32.xlu0 %v719, 96
    %v722 = vpop.permute.xlu0 %721
    %724 = vst.msk [vmem:[#allocation4] sm:$0x1] %vm709, %v722
    // Predicated region
    $region18: #{tpu_custom_call.1} parent=1 // pred_check
      _
    $region19: #{tpu_custom_call.1} parent=1 // pred_check_branch
      %726 = sbr.rel (0) target = $region21
    $region20: #{tpu_custom_call.1} parent=1 // pred_region
      %s728 = ssub.s32 16, 16
      %729 = vsyncadd [#allocation3], %s728
      %s731 = sshll.u32 [#allocation2], 4
      %s732 = int_to_ptr.vmem [resolvable:$true] %s731
      %734 = dma.vmem_to_hbm [thread:$0]  %s732, 16, %s4, [#allocation3]
    $region21: #{tpu_custom_call.1} parent=1 // pred_fallthru
      _
    // Predicated region
    $region22: #{tpu_custom_call.1} parent=1 // pred_check
      _
    $region23: #{tpu_custom_call.1} parent=1 // pred_check_branch
      %736 = sbr.rel (0) target = $region25
    $region24: #{tpu_custom_call.1} parent=1 // pred_region
      %s738 = ssub.s32 16, 16
      %739 = vsyncadd [#allocation5], %s738
      %s741 = sshll.u32 [#allocation4], 4
      %s742 = int_to_ptr.vmem [resolvable:$true] %s741
      %744 = dma.vmem_to_hbm [thread:$0]  %s742, 16, %s5, [#allocation5]
    $region25: #{tpu_custom_call.1} parent=1 // pred_fallthru
      _
    // Predicated region
    $region26: #{tpu_custom_call.1} parent=1 // pred_check
      _
    $region27: #{tpu_custom_call.1} parent=1 // pred_check_branch
      %746 = sbr.rel (0) target = $region29
    $region28: #{tpu_custom_call.1} parent=1 // pred_region
      %747 = dma.done [#allocation3], 16
    $region29: #{tpu_custom_call.1} parent=1 // pred_fallthru
      _
    // Predicated region
    $region30: #{tpu_custom_call.1} parent=1 // pred_check
      _
    $region31: #{tpu_custom_call.1} parent=1 // pred_check_branch
      %749 = sbr.rel (0) target = $region33
    $region32: #{tpu_custom_call.1} parent=1 // pred_region
      %750 = dma.done [#allocation5], 16
    $region33: #{tpu_custom_call.1} parent=1 // pred_fallthru
      _
    %751 = vsyncpa [#allocation3], 1
    %752 = vsyncpa [#allocation5], 1

</llo_original>
